<compile_context>
chip_gen: v5e
topology: v5e:2x2
jax: 0.10.0
libtpu: 0.0.40
codegen_flags: <defaults>
</compile_context>

<pallas_src>
import functools

import jax
import jax.numpy as jnp
from jax.experimental import pallas as pl
from jax.experimental.pallas import tpu as pltpu


def _round_up(n, m):
    return ((n + m - 1) // m) * m


def _mlp(h, w1, b1, w2, b2, w3, b3, w4, b4):
    """4-layer MLP on one (rows, in_dim) slab: bf16 MXU matmuls with f32
    accumulation; bias-add + ReLU in f32 on the VPU."""
    h = h.astype(jnp.bfloat16)
    h = jnp.dot(h, w1, preferred_element_type=jnp.float32) + b1
    h = jnp.maximum(h, 0.0).astype(jnp.bfloat16)
    h = jnp.dot(h, w2, preferred_element_type=jnp.float32) + b2
    h = jnp.maximum(h, 0.0).astype(jnp.bfloat16)
    h = jnp.dot(h, w3, preferred_element_type=jnp.float32) + b3
    h = jnp.maximum(h, 0.0).astype(jnp.bfloat16)
    h = jnp.dot(h, w4, preferred_element_type=jnp.float32) + b4
    return h


def _dqn_kernel(x_ref,
                w1_ref, b1_ref, w2_ref, b2_ref, w3_ref, b3_ref, w4_ref, b4_ref,
                o_ref, *, num_subtiles, sub_rows):
    w1, b1 = w1_ref[...], b1_ref[...]
    w2, b2 = w2_ref[...], b2_ref[...]
    w3, b3 = w3_ref[...], b3_ref[...]
    w4, b4 = w4_ref[...], b4_ref[...]
    # Independent sub-tiles: the scheduler can hide one sub-tile's VPU
    # bias/ReLU/cast epilogue behind the other sub-tile's MXU matmuls.
    for s in range(num_subtiles):
        r0 = s * sub_rows  # static, sublane-aligned offset
        h = _mlp(x_ref[pl.ds(r0, sub_rows), :], w1, b1, w2, b2, w3, b3, w4, b4)
        o_ref[pl.ds(r0, sub_rows), :] = h.astype(o_ref.dtype)


def prepare_params(params):
    """One-time conversion from PyTorch nn.Linear layout to kernel layout.

    - W: (out, in) f32  ->  (in, out) bf16  (transpose happens ONCE, not per call)
    - b: (out,)   f32  ->  (1, out)  f32
    No output-dim padding: the kernel stores the true out_dim (masked store is
    far cheaper than a 16x-inflated padded f32 writeback + wrapper slice).
    """
    prep = {}
    for name in ("fc1", "fc2", "fc3", "fc4"):
        w, b = params[name]
        prep[name] = (jnp.asarray(w).T.astype(jnp.bfloat16),
                      jnp.asarray(b)[None, :].astype(jnp.float32))
    return prep


def _pick_tile(B, tm):
    """Batch-tile rows. >= 8 (sublane rule); caller may override via tm."""
    b8 = _round_up(max(int(B), 1), 8)
    if tm is not None:
        return min(max(8, _round_up(int(tm), 8)), b8)
    if b8 <= 16:
        return b8  # tiny serving batch: one minimal tile (launch-bound anyway)
    # At least two grid steps so the "parallel" batch axis shards across v7x's
    # two TensorCores; cap tiles at 512 rows (amortizes the ~0.35us/step grid
    # overhead; resident activations+weights stay < ~1 MiB, far under 64 MiB
    # VMEM even on v7x, so no generation-specific tiling fork).
    return min(512, _round_up(-(-b8 // 2), 8))


def sample_dqn_forward(x, prep, *, tm=None):
    """x: (B, input_dim) float32 or bfloat16 (bf16 halves the input DMA).
    prep: output of prepare_params(). Returns (B, out_dim) float32."""
    B, in_dim = x.shape
    (w1, b1), (w2, b2), (w3, b3), (w4, b4) = (
        prep["fc1"], prep["fc2"], prep["fc3"], prep["fc4"])
    assert w1.shape[0] == in_dim
    out_dim = w4.shape[1]

    tm = _pick_tile(B, tm)
    B_pad = _round_up(B, tm)
    if B_pad != B:
        x = jnp.pad(x, ((0, B_pad - B), (0, 0)))
    grid = (B_pad // tm,)

    # Split big tiles into two independent halves for MXU/VPU overlap; keep
    # small tiles whole (they are launch/DMA bound, splitting only adds ops).
    num_subtiles = 2 if (tm >= 128 and tm % 16 == 0) else 1
    sub_rows = tm // num_subtiles

    def const_spec(arr):
        # Same block index every grid step -> weight DMA'd once per call,
        # stays VMEM-resident across all batch tiles.
        return pl.BlockSpec(arr.shape, lambda i: (0, 0))

    in_specs = [
        pl.BlockSpec((tm, in_dim), lambda i: (i, 0)),
        const_spec(w1), const_spec(b1),
        const_spec(w2), const_spec(b2),
        const_spec(w3), const_spec(b3),
        const_spec(w4), const_spec(b4),
    ]
    out_spec = pl.BlockSpec((tm, out_dim), lambda i: (i, 0))

    flops = 2 * B_pad * (in_dim * 256 + 256 * 256 + 256 * 128 + 128 * out_dim)
    param_bytes = sum(int(a.size) * a.dtype.itemsize
                      for a in (w1, b1, w2, b2, w3, b3, w4, b4))
    bytes_accessed = (int(x.size) * x.dtype.itemsize
                      + param_bytes
                      + B_pad * out_dim * 4)

    out = pl.pallas_call(
        functools.partial(_dqn_kernel,
                          num_subtiles=num_subtiles, sub_rows=sub_rows),
        out_shape=jax.ShapeDtypeStruct((B_pad, out_dim), jnp.float32),
        grid=grid,
        in_specs=in_specs,
        out_specs=out_spec,
        compiler_params=pltpu.CompilerParams(
            dimension_semantics=("parallel",),  # batch tiles shard across TCs
        ),
        cost_estimate=pl.CostEstimate(flops=flops, transcendentals=0,
                                      bytes_accessed=bytes_accessed),
    )(x, w1, b1, w2, b2, w3, b3, w4, b4)

    return out if B_pad == B else out[:B]


def init_params(key, input_dim, num_actions, num_of_uav):
    """Deterministic init mimicking PyTorch nn.Linear default:
    W, b ~ U(-1/sqrt(fan_in), 1/sqrt(fan_in)); W stored as (out, in)."""
    dims = [(input_dim, 256), (256, 256), (256, 128),
            (128, int(num_actions * num_of_uav))]
    params = {}
    for i, (fan_in, fan_out) in enumerate(dims, start=1):
        key, kw, kb = jax.random.split(key, 3)
        bound = 1.0 / jnp.sqrt(float(fan_in))
        w = jax.random.uniform(kw, (fan_out, fan_in), jnp.float32, -bound, bound)
        b = jax.random.uniform(kb, (fan_out,), jnp.float32, -bound, bound)
        params[f"fc{i}"] = (w, b)
    return params


def reference_forward_f32(x, params):
    """Pure-f32 reference matching the PyTorch module semantics."""
    h = x
    for name in ("fc1", "fc2", "fc3"):
        w, b = params[name]
        h = jnp.maximum(h @ w.T + b, 0.0)
    w, b = params["fc4"]
    return h @ w.T + b


def reference_forward_bf16(x, prep):
    """Emulates the kernel's bf16-MXU / f32-accumulate path with plain XLA ops."""
    h = x.astype(jnp.bfloat16)
    for name in ("fc1", "fc2", "fc3"):
        w, b = prep[name]
        h = jnp.dot(h, w, preferred_element_type=jnp.float32) + b
        h = jnp.maximum(h, 0.0).astype(jnp.bfloat16)
    w, b = prep["fc4"]
    return jnp.dot(h, w, preferred_element_type=jnp.float32) + b


if __name__ == "__main__":
    input_dim = 32
    num_actions = 4
    num_of_uav = 2
    out_dim = int(num_actions * num_of_uav)

    key = jax.random.PRNGKey(0)
    key, kx = jax.random.split(key)
    params = init_params(key, input_dim, num_actions, num_of_uav)
    prep = prepare_params(params)  # one-time layout/dtype conversion

    # --- Small serving-style batch (B=2): launch-overhead bound by design;
    # throughput comes from batching requests at the call site. ---
    x = jax.random.normal(kx, (2, input_dim), jnp.float32)
    out = jax.block_until_ready(sample_dqn_forward(x, prep))
    assert out.shape == (2, out_dim), out.shape

    ref_bf16 = reference_forward_bf16(x, prep)
    assert jnp.allclose(out, ref_bf16, atol=2e-3, rtol=2e-3), (
        float(jnp.max(jnp.abs(out - ref_bf16))))
    ref_f32 = reference_forward_f32(x, params)
    assert jnp.allclose(out, ref_f32, atol=1e-1, rtol=1e-1), (
        float(jnp.max(jnp.abs(out - ref_f32))))

    # --- Larger batch: exercises multi-tile grid (>=2 steps -> v7x 2-TC
    # sharding), batch-row padding, and the two-half-tile overlap path. ---
    key, kx2 = jax.random.split(key)
    xb = jax.random.normal(kx2, (250, input_dim), jnp.float32)
    outb = jax.block_until_ready(sample_dqn_forward(xb, prep))
    assert outb.shape == (250, out_dim), outb.shape
    refb = reference_forward_bf16(xb, prep)
    assert jnp.allclose(outb, refb, atol=2e-3, rtol=2e-3), (
        float(jnp.max(jnp.abs(outb - refb))))

    # --- bf16 activations are accepted directly (halves input DMA). ---
    outc = jax.block_until_ready(
        sample_dqn_forward(x.astype(jnp.bfloat16), prep))
    assert jnp.allclose(outc, ref_bf16, atol=2e-3, rtol=2e-3), (
        float(jnp.max(jnp.abs(outc - ref_bf16))))

    print("KERNEL_OK")
</pallas_src>

<mosaic_0001>
module attributes {stable_mosaic.version = 11 : i64} {
  func.func @_dqn_kernel(%arg0: i32, %arg1: memref<8x32xf32, #tpu.memory_space<vmem>>, %arg2: memref<32x256xbf16, #tpu.memory_space<vmem>>, %arg3: memref<1x256xf32, #tpu.memory_space<vmem>>, %arg4: memref<256x256xbf16, #tpu.memory_space<vmem>>, %arg5: memref<1x256xf32, #tpu.memory_space<vmem>>, %arg6: memref<256x128xbf16, #tpu.memory_space<vmem>>, %arg7: memref<1x128xf32, #tpu.memory_space<vmem>>, %arg8: memref<128x8xbf16, #tpu.memory_space<vmem>>, %arg9: memref<1x8xf32, #tpu.memory_space<vmem>>, %arg10: memref<8x8xf32, #tpu.memory_space<vmem>>) attributes {dimension_semantics = [#tpu.dimension_semantics<parallel>], iteration_bounds = array<i64: 1>, scalar_prefetch = 0 : i64, scratch_operands = 0 : i64, tpu.core_type = #tpu.core_type<tc>, window_params = [{transform_indices = @transform_0, window_bounds = array<i64: 8, 32>}, {pipeline_mode = #tpu.pipeline_mode<synchronous>, transform_indices = @transform_1, window_bounds = array<i64: 32, 256>}, {pipeline_mode = #tpu.pipeline_mode<synchronous>, transform_indices = @transform_2, window_bounds = array<i64: 1, 256>}, {pipeline_mode = #tpu.pipeline_mode<synchronous>, transform_indices = @transform_3, window_bounds = array<i64: 256, 256>}, {pipeline_mode = #tpu.pipeline_mode<synchronous>, transform_indices = @transform_4, window_bounds = array<i64: 1, 256>}, {pipeline_mode = #tpu.pipeline_mode<synchronous>, transform_indices = @transform_5, window_bounds = array<i64: 256, 128>}, {pipeline_mode = #tpu.pipeline_mode<synchronous>, transform_indices = @transform_6, window_bounds = array<i64: 1, 128>}, {pipeline_mode = #tpu.pipeline_mode<synchronous>, transform_indices = @transform_7, window_bounds = array<i64: 128, 8>}, {pipeline_mode = #tpu.pipeline_mode<synchronous>, transform_indices = @transform_8, window_bounds = array<i64: 1, 8>}, {transform_indices = @transform_9, window_bounds = array<i64: 8, 8>}]} {
    %c0 = arith.constant 0 : index
    %c0_0 = arith.constant 0 : index
    %0 = vector.load %arg2[%c0, %c0_0] : memref<32x256xbf16, #tpu.memory_space<vmem>>, vector<32x256xbf16>
    %c0_1 = arith.constant 0 : index
    %c0_2 = arith.constant 0 : index
    %1 = vector.load %arg3[%c0_1, %c0_2] : memref<1x256xf32, #tpu.memory_space<vmem>>, vector<1x256xf32>
    %c0_3 = arith.constant 0 : index
    %c0_4 = arith.constant 0 : index
    %2 = vector.load %arg4[%c0_3, %c0_4] : memref<256x256xbf16, #tpu.memory_space<vmem>>, vector<256x256xbf16>
    %c0_5 = arith.constant 0 : index
    %c0_6 = arith.constant 0 : index
    %3 = vector.load %arg5[%c0_5, %c0_6] : memref<1x256xf32, #tpu.memory_space<vmem>>, vector<1x256xf32>
    %c0_7 = arith.constant 0 : index
    %c0_8 = arith.constant 0 : index
    %4 = vector.load %arg6[%c0_7, %c0_8] : memref<256x128xbf16, #tpu.memory_space<vmem>>, vector<256x128xbf16>
    %c0_9 = arith.constant 0 : index
    %c0_10 = arith.constant 0 : index
    %5 = vector.load %arg7[%c0_9, %c0_10] : memref<1x128xf32, #tpu.memory_space<vmem>>, vector<1x128xf32>
    %c0_11 = arith.constant 0 : index
    %c0_12 = arith.constant 0 : index
    %6 = vector.load %arg8[%c0_11, %c0_12] : memref<128x8xbf16, #tpu.memory_space<vmem>>, vector<128x8xbf16>
    %c0_13 = arith.constant 0 : index
    %c0_14 = arith.constant 0 : index
    %7 = vector.load %arg9[%c0_13, %c0_14] : memref<1x8xf32, #tpu.memory_space<vmem>>, vector<1x8xf32>
    %c0_15 = arith.constant 0 : index
    %c0_16 = arith.constant 0 : index
    %8 = vector.load %arg1[%c0_15, %c0_16] : memref<8x32xf32, #tpu.memory_space<vmem>>, vector<8x32xf32>
    %9 = arith.truncf %8 : vector<8x32xf32> to vector<8x32xbf16>
    %cst = arith.constant dense<0.000000e+00> : vector<8x256xf32>
    %10 = tpu.matmul %9, %0, %cst {dimension_numbers = #tpu.dot_dimension_numbers<[1], [0], [0], [1], [0, 0, 1, 1], [], []>} : vector<8x32xbf16>, vector<32x256xbf16>, vector<8x256xf32> -> vector<8x256xf32>
    %11 = vector.broadcast %1 : vector<1x256xf32> to vector<8x256xf32>
    %12 = arith.addf %10, %11 : vector<8x256xf32>
    %cst_17 = arith.constant 0.000000e+00 : f32
    %13 = vector.broadcast %cst_17 : f32 to vector<8x256xf32>
    %14 = arith.maximumf %12, %13 : vector<8x256xf32>
    %15 = arith.truncf %14 : vector<8x256xf32> to vector<8x256xbf16>
    %cst_18 = arith.constant dense<0.000000e+00> : vector<8x256xf32>
    %16 = tpu.matmul %15, %2, %cst_18 {dimension_numbers = #tpu.dot_dimension_numbers<[1], [0], [0], [1], [0, 0, 1, 1], [], []>} : vector<8x256xbf16>, vector<256x256xbf16>, vector<8x256xf32> -> vector<8x256xf32>
    %17 = vector.broadcast %3 : vector<1x256xf32> to vector<8x256xf32>
    %18 = arith.addf %16, %17 : vector<8x256xf32>
    %cst_19 = arith.constant 0.000000e+00 : f32
    %19 = vector.broadcast %cst_19 : f32 to vector<8x256xf32>
    %20 = arith.maximumf %18, %19 : vector<8x256xf32>
    %21 = arith.truncf %20 : vector<8x256xf32> to vector<8x256xbf16>
    %cst_20 = arith.constant dense<0.000000e+00> : vector<8x128xf32>
    %22 = tpu.matmul %21, %4, %cst_20 {dimension_numbers = #tpu.dot_dimension_numbers<[1], [0], [0], [1], [0, 0, 1, 1], [], []>} : vector<8x256xbf16>, vector<256x128xbf16>, vector<8x128xf32> -> vector<8x128xf32>
    %23 = vector.broadcast %5 : vector<1x128xf32> to vector<8x128xf32>
    %24 = arith.addf %22, %23 : vector<8x128xf32>
    %cst_21 = arith.constant 0.000000e+00 : f32
    %25 = vector.broadcast %cst_21 : f32 to vector<8x128xf32>
    %26 = arith.maximumf %24, %25 : vector<8x128xf32>
    %27 = arith.truncf %26 : vector<8x128xf32> to vector<8x128xbf16>
    %cst_22 = arith.constant dense<0.000000e+00> : vector<8x8xf32>
    %28 = tpu.matmul %27, %6, %cst_22 {dimension_numbers = #tpu.dot_dimension_numbers<[1], [0], [0], [1], [0, 0, 1, 1], [], []>} : vector<8x128xbf16>, vector<128x8xbf16>, vector<8x8xf32> -> vector<8x8xf32>
    %29 = vector.broadcast %7 : vector<1x8xf32> to vector<8x8xf32>
    %30 = arith.addf %28, %29 : vector<8x8xf32>
    %c0_23 = arith.constant 0 : index
    %c0_24 = arith.constant 0 : index
    %31 = vector.load %arg10[%c0_23, %c0_24] : memref<8x8xf32, #tpu.memory_space<vmem>>, vector<8x8xf32>
    tpu.vector_store %arg10[%c0_23, %c0_24], %30 {strides = array<i32>} : memref<8x8xf32, #tpu.memory_space<vmem>>, vector<8x8xf32>,
    return
  }
  func.func @transform_0(%arg0: i32) -> (i32, i32) {
    %c0_i32 = arith.constant 0 : i32
    %c0_i32_0 = arith.constant 0 : i32
    return %arg0, %c0_i32 : i32, i32
  }
  func.func @transform_1(%arg0: i32) -> (i32, i32) {
    %c0_i32 = arith.constant 0 : i32
    %c0_i32_0 = arith.constant 0 : i32
    %c0_i32_1 = arith.constant 0 : i32
    return %c0_i32, %c0_i32_0 : i32, i32
  }
  func.func @transform_2(%arg0: i32) -> (i32, i32) {
    %c0_i32 = arith.constant 0 : i32
    %c0_i32_0 = arith.constant 0 : i32
    %c0_i32_1 = arith.constant 0 : i32
    return %c0_i32, %c0_i32_0 : i32, i32
  }
  func.func @transform_3(%arg0: i32) -> (i32, i32) {
    %c0_i32 = arith.constant 0 : i32
    %c0_i32_0 = arith.constant 0 : i32
    %c0_i32_1 = arith.constant 0 : i32
    return %c0_i32, %c0_i32_0 : i32, i32
  }
  func.func @transform_4(%arg0: i32) -> (i32, i32) {
    %c0_i32 = arith.constant 0 : i32
    %c0_i32_0 = arith.constant 0 : i32
    %c0_i32_1 = arith.constant 0 : i32
    return %c0_i32, %c0_i32_0 : i32, i32
  }
  func.func @transform_5(%arg0: i32) -> (i32, i32) {
    %c0_i32 = arith.constant 0 : i32
    %c0_i32_0 = arith.constant 0 : i32
    %c0_i32_1 = arith.constant 0 : i32
    return %c0_i32, %c0_i32_0 : i32, i32
  }
  func.func @transform_6(%arg0: i32) -> (i32, i32) {
    %c0_i32 = arith.constant 0 : i32
    %c0_i32_0 = arith.constant 0 : i32
    %c0_i32_1 = arith.constant 0 : i32
    return %c0_i32, %c0_i32_0 : i32, i32
  }
  func.func @transform_7(%arg0: i32) -> (i32, i32) {
    %c0_i32 = arith.constant 0 : i32
    %c0_i32_0 = arith.constant 0 : i32
    %c0_i32_1 = arith.constant 0 : i32
    return %c0_i32, %c0_i32_0 : i32, i32
  }
  func.func @transform_8(%arg0: i32) -> (i32, i32) {
    %c0_i32 = arith.constant 0 : i32
    %c0_i32_0 = arith.constant 0 : i32
    %c0_i32_1 = arith.constant 0 : i32
    return %c0_i32, %c0_i32_0 : i32, i32
  }
  func.func @transform_9(%arg0: i32) -> (i32, i32) {
    %c0_i32 = arith.constant 0 : i32
    %c0_i32_0 = arith.constant 0 : i32
    return %arg0, %c0_i32 : i32, i32
  }
}

</mosaic_0001>

<llo_original>
// kernel: tpu_custom_call.1
$region0: #{tpu_custom_call.1}
  #allocation0 [shape = 'u32[]', space=smem, size = 0x4, offset = 0x4, fixed_abs, tag = 'smem constant byte address 0x4 - core index']
  #allocation1 [shape = 'u32[72,128]{1,0:T(1,128)}', space=vmem, size = 0x9000, scoped, tag = 'internal scratch']
  %s0 = inlined_call_operand.vmem [shape: f32[8,32], index: 0, kind: input, shape index: {}]
  %s1 = inlined_call_operand.vmem [shape: bf16[32,256], index: 1, kind: input, shape index: {}]
  %s2 = inlined_call_operand.vmem [shape: f32[1,256], index: 2, kind: input, shape index: {}]
  %s3 = inlined_call_operand.hbm [shape: bf16[256,256], index: 3, kind: input, shape index: {}]
  %s4 = inlined_call_operand.vmem [shape: f32[1,256], index: 4, kind: input, shape index: {}]
  %s5 = inlined_call_operand.hbm [shape: bf16[256,128], index: 5, kind: input, shape index: {}]
  %s6 = inlined_call_operand.vmem [shape: f32[1,128], index: 6, kind: input, shape index: {}]
  %s7 = inlined_call_operand.vmem [shape: bf16[128,8], index: 7, kind: input, shape index: {}]
  %s8 = inlined_call_operand.vmem [shape: f32[1,8], index: 8, kind: input, shape index: {}]
  %s9 = inlined_call_operand.hbm [shape: f32[8,8], index: 9, kind: output, shape index: {}]
  %s10 = sld [smem:[#allocation0]]
  $region54: #{tpu_custom_call.1} parent=0
    _
  %s12 = ssub.s32 1, %s10
  %s13 = scalar_select 0, %s12, %s10
  $region1: #{tpu_custom_call.1} parent=0
    #allocation2 [shape = 'u8[131072]{0}', space=vmem, size = 0x20000, scoped, tag = 'input window, operand 3, single buffered']
    #allocation3 [shape = 's32[1]{0}', space=sflag, size = 0x4, scoped, tag = 'scoped memory for tpu_custom_call.1']
    #allocation4 [shape = 's32[1]{0}', space=sflag, size = 0x4, scoped, tag = 'scoped memory for tpu_custom_call.1']
    #allocation5 [shape = 'u8[65536]{0}', space=vmem, size = 0x10000, scoped, tag = 'input window, operand 5, single buffered']
    #allocation6 [shape = 's32[1]{0}', space=sflag, size = 0x4, scoped, tag = 'scoped memory for tpu_custom_call.1']
    #allocation7 [shape = 'u8[4096]{0}', space=vmem, size = 0x1000, scoped, tag = 'output window, operand 0, single buffered']
    %14 = vsyncpa [#allocation3], 0
    %15 = vsyncpa [#allocation6], 0
    %16 = vsyncpa [#allocation4], 0
    // Predicated region
    $region2: #{tpu_custom_call.1} parent=1 // pred_check
      _
    $region3: #{tpu_custom_call.1} parent=1 // pred_check_branch
      %18 = sbr.rel (0) target = $region5
    $region4: #{tpu_custom_call.1} parent=1 // pred_region
      _
    $region5: #{tpu_custom_call.1} parent=1 // pred_fallthru
      _
    // Predicated region
    $region6: #{tpu_custom_call.1} parent=1 // pred_check
      _
    $region7: #{tpu_custom_call.1} parent=1 // pred_check_branch
      %20 = sbr.rel (0) target = $region9
    $region8: #{tpu_custom_call.1} parent=1 // pred_region
      _
    $region9: #{tpu_custom_call.1} parent=1 // pred_fallthru
      _
    // Predicated region
    $region10: #{tpu_custom_call.1} parent=1 // pred_check
      _
    $region11: #{tpu_custom_call.1} parent=1 // pred_check_branch
      %22 = sbr.rel (0) target = $region13
    $region12: #{tpu_custom_call.1} parent=1 // pred_region
      _
    $region13: #{tpu_custom_call.1} parent=1 // pred_fallthru
      _
    // Predicated region
    $region14: #{tpu_custom_call.1} parent=1 // pred_check
      _
    $region15: #{tpu_custom_call.1} parent=1 // pred_check_branch
      %24 = sbr.rel (0) target = $region17
    $region16: #{tpu_custom_call.1} parent=1 // pred_region
      %26 = vsyncadd [#allocation3], 0
      %s27 = sshll.u32 %s3, 4
      %s28 = int_to_ptr.hbm [resolvable:$true] %s27
      %s29 = sshll.u32 [#allocation2], 4
      %s30 = int_to_ptr.vmem [resolvable:$true] %s29
      %35 = dma.hbm_to_vmem [thread:$0]  %s28, 4096, %s30, [#allocation3], 128, 128, 8
    $region17: #{tpu_custom_call.1} parent=1 // pred_fallthru
      _
    // Predicated region
    $region18: #{tpu_custom_call.1} parent=1 // pred_check
      _
    $region19: #{tpu_custom_call.1} parent=1 // pred_check_branch
      %37 = sbr.rel (0) target = $region21
    $region20: #{tpu_custom_call.1} parent=1 // pred_region
      _
    $region21: #{tpu_custom_call.1} parent=1 // pred_fallthru
      _
    // Predicated region
    $region22: #{tpu_custom_call.1} parent=1 // pred_check
      _
    $region23: #{tpu_custom_call.1} parent=1 // pred_check_branch
      %39 = sbr.rel (0) target = $region25
    $region24: #{tpu_custom_call.1} parent=1 // pred_region
      %41 = vsyncadd [#allocation6], 0
      %s42 = sshll.u32 %s5, 4
      %s43 = int_to_ptr.hbm [resolvable:$true] %s42
      %s44 = sshll.u32 [#allocation5], 4
      %s45 = int_to_ptr.vmem [resolvable:$true] %s44
      %50 = dma.hbm_to_vmem [thread:$0]  %s43, 2048, %s45, [#allocation6], 64, 64, 4
    $region25: #{tpu_custom_call.1} parent=1 // pred_fallthru
      _
    // Predicated region
    $region26: #{tpu_custom_call.1} parent=1 // pred_check
      _
    $region27: #{tpu_custom_call.1} parent=1 // pred_check_branch
      %52 = sbr.rel (0) target = $region29
    $region28: #{tpu_custom_call.1} parent=1 // pred_region
      _
    $region29: #{tpu_custom_call.1} parent=1 // pred_fallthru
      _
    // Predicated region
    $region30: #{tpu_custom_call.1} parent=1 // pred_check
      _
    $region31: #{tpu_custom_call.1} parent=1 // pred_check_branch
      %54 = sbr.rel (0) target = $region33
    $region32: #{tpu_custom_call.1} parent=1 // pred_region
      _
    $region33: #{tpu_custom_call.1} parent=1 // pred_fallthru
      _
    // Predicated region
    $region34: #{tpu_custom_call.1} parent=1 // pred_check
      _
    $region35: #{tpu_custom_call.1} parent=1 // pred_check_branch
      %56 = sbr.rel (0) target = $region37
    $region36: #{tpu_custom_call.1} parent=1 // pred_region
      _
    $region37: #{tpu_custom_call.1} parent=1 // pred_fallthru
      _
    // Predicated region
    $region38: #{tpu_custom_call.1} parent=1 // pred_check
      _
    $region39: #{tpu_custom_call.1} parent=1 // pred_check_branch
      %58 = sbr.rel (0) target = $region41
    $region40: #{tpu_custom_call.1} parent=1 // pred_region
      %60 = dma.done [#allocation3], 4096
    $region41: #{tpu_custom_call.1} parent=1 // pred_fallthru
      _
    // Predicated region
    $region42: #{tpu_custom_call.1} parent=1 // pred_check
      _
    $region43: #{tpu_custom_call.1} parent=1 // pred_check_branch
      %62 = sbr.rel (0) target = $region45
    $region44: #{tpu_custom_call.1} parent=1 // pred_region
      %64 = dma.done [#allocation6], 2048
    $region45: #{tpu_custom_call.1} parent=1 // pred_fallthru
      _
    %v66 = vld [vmem:[%s1] sm:$0xff]
    %v67 = vld [vmem:[%s1 + $0x8] sm:$0xff]
    %v68 = vld [vmem:[%s1 + $0x10] sm:$0xff]
    %v69 = vld [vmem:[%s1 + $0x18] sm:$0xff]
    %v70 = vld [vmem:[%s2] sm:$0x3]
    %v71 = vld [vmem:[#allocation2] sm:$0xff]
    %v72 = vld [vmem:[#allocation2 + $0x8] sm:$0xff]
    %v73 = vld [vmem:[#allocation2 + $0x10] sm:$0xff]
    %v74 = vld [vmem:[#allocation2 + $0x18] sm:$0xff]
    %v75 = vld [vmem:[#allocation2 + $0x20] sm:$0xff]
    %v76 = vld [vmem:[#allocation2 + $0x28] sm:$0xff]
    %v77 = vld [vmem:[#allocation2 + $0x30] sm:$0xff]
    %v78 = vld [vmem:[#allocation2 + $0x38] sm:$0xff]
    %v79 = vld [vmem:[#allocation2 + $0x40] sm:$0xff]
    %v80 = vld [vmem:[#allocation2 + $0x48] sm:$0xff]
    %v81 = vld [vmem:[#allocation2 + $0x50] sm:$0xff]
    %v82 = vld [vmem:[#allocation2 + $0x58] sm:$0xff]
    %v83 = vld [vmem:[#allocation2 + $0x60] sm:$0xff]
    %v84 = vld [vmem:[#allocation2 + $0x68] sm:$0xff]
    %v85 = vld [vmem:[#allocation2 + $0x70] sm:$0xff]
    %v86 = vld [vmem:[#allocation2 + $0x78] sm:$0xff]
    %v87 = vld [vmem:[#allocation2 + $0x80] sm:$0xff]
    %v88 = vld [vmem:[#allocation2 + $0x88] sm:$0xff]
    %v89 = vld [vmem:[#allocation2 + $0x90] sm:$0xff]
    %v90 = vld [vmem:[#allocation2 + $0x98] sm:$0xff]
    %v91 = vld [vmem:[#allocation2 + $0xa0] sm:$0xff]
    %v92 = vld [vmem:[#allocation2 + $0xa8] sm:$0xff]
    %v93 = vld [vmem:[#allocation2 + $0xb0] sm:$0xff]
    %v94 = vld [vmem:[#allocation2 + $0xb8] sm:$0xff]
    %v95 = vld [vmem:[#allocation2 + $0xc0] sm:$0xff]
    %v96 = vld [vmem:[#allocation2 + $0xc8] sm:$0xff]
    %v97 = vld [vmem:[#allocation2 + $0xd0] sm:$0xff]
    %v98 = vld [vmem:[#allocation2 + $0xd8] sm:$0xff]
    %v99 = vld [vmem:[#allocation2 + $0xe0] sm:$0xff]
    %v100 = vld [vmem:[#allocation2 + $0xe8] sm:$0xff]
    %v101 = vld [vmem:[#allocation2 + $0xf0] sm:$0xff]
    %v102 = vld [vmem:[#allocation2 + $0xf8] sm:$0xff]
    %v103 = vld [vmem:[%s4] sm:$0x3]
    %v104 = vld [vmem:[#allocation5] sm:$0xf]
    %v105 = vld [vmem:[#allocation5 + $0x4] sm:$0xf]
    %v106 = vld [vmem:[#allocation5 + $0x8] sm:$0xf]
    %v107 = vld [vmem:[#allocation5 + $0xc] sm:$0xf]
    %v108 = vld [vmem:[#allocation5 + $0x10] sm:$0xf]
    %v109 = vld [vmem:[#allocation5 + $0x14] sm:$0xf]
    %v110 = vld [vmem:[#allocation5 + $0x18] sm:$0xf]
    %v111 = vld [vmem:[#allocation5 + $0x1c] sm:$0xf]
    %v112 = vld [vmem:[#allocation5 + $0x20] sm:$0xf]
    %v113 = vld [vmem:[#allocation5 + $0x24] sm:$0xf]
    %v114 = vld [vmem:[#allocation5 + $0x28] sm:$0xf]
    %v115 = vld [vmem:[#allocation5 + $0x2c] sm:$0xf]
    %v116 = vld [vmem:[#allocation5 + $0x30] sm:$0xf]
    %v117 = vld [vmem:[#allocation5 + $0x34] sm:$0xf]
    %v118 = vld [vmem:[#allocation5 + $0x38] sm:$0xf]
    %v119 = vld [vmem:[#allocation5 + $0x3c] sm:$0xf]
    %v120 = vld [vmem:[#allocation5 + $0x40] sm:$0xf]
    %v121 = vld [vmem:[#allocation5 + $0x44] sm:$0xf]
    %v122 = vld [vmem:[#allocation5 + $0x48] sm:$0xf]
    %v123 = vld [vmem:[#allocation5 + $0x4c] sm:$0xf]
    %v124 = vld [vmem:[#allocation5 + $0x50] sm:$0xf]
    %v125 = vld [vmem:[#allocation5 + $0x54] sm:$0xf]
    %v126 = vld [vmem:[#allocation5 + $0x58] sm:$0xf]
    %v127 = vld [vmem:[#allocation5 + $0x5c] sm:$0xf]
    %v128 = vld [vmem:[#allocation5 + $0x60] sm:$0xf]
    %v129 = vld [vmem:[#allocation5 + $0x64] sm:$0xf]
    %v130 = vld [vmem:[#allocation5 + $0x68] sm:$0xf]
    %v131 = vld [vmem:[#allocation5 + $0x6c] sm:$0xf]
    %v132 = vld [vmem:[#allocation5 + $0x70] sm:$0xf]
    %v133 = vld [vmem:[#allocation5 + $0x74] sm:$0xf]
    %v134 = vld [vmem:[#allocation5 + $0x78] sm:$0xf]
    %v135 = vld [vmem:[#allocation5 + $0x7c] sm:$0xf]
    %v136 = vld [vmem:[%s6] sm:$0x1]
    %v137 = vld [vmem:[%s7] sm:$0xf]
    %v138 = vld [vmem:[%s7 + $0x4] sm:$0xf]
    %v139 = vld [vmem:[%s7 + $0x8] sm:$0xf]
    %v140 = vld [vmem:[%s7 + $0xc] sm:$0xf]
    %v141 = vld [vmem:[%s7 + $0x10] sm:$0xf]
    %v142 = vld [vmem:[%s7 + $0x14] sm:$0xf]
    %v143 = vld [vmem:[%s7 + $0x18] sm:$0xf]
    %v144 = vld [vmem:[%s7 + $0x1c] sm:$0xf]
    %v145 = vld [vmem:[%s7 + $0x20] sm:$0xf]
    %v146 = vld [vmem:[%s7 + $0x24] sm:$0xf]
    %v147 = vld [vmem:[%s7 + $0x28] sm:$0xf]
    %v148 = vld [vmem:[%s7 + $0x2c] sm:$0xf]
    %v149 = vld [vmem:[%s7 + $0x30] sm:$0xf]
    %v150 = vld [vmem:[%s7 + $0x34] sm:$0xf]
    %v151 = vld [vmem:[%s7 + $0x38] sm:$0xf]
    %v152 = vld [vmem:[%s7 + $0x3c] sm:$0xf]
    %v153 = vld [vmem:[%s8] sm:$0x1]
    %v154 = vld [vmem:[%s0] sm:$0xff]
    %v155 = vpack.c.bf16 %v154, %v154
    %v157 = vperm.slane %v70, 0
    %v158 = vperm.slane %v70, 1
    %v165 = vunpack.c.l.b16 %v66
    %v166 = vunpack.c.h.b16 %v66
    %v167 = vunpack.c.l.b16 %v67
    %v168 = vunpack.c.h.b16 %v67
    %v169 = vunpack.c.l.b16 %v68
    %v170 = vunpack.c.h.b16 %v68
    %v171 = vunpack.c.l.b16 %v69
    %v172 = vunpack.c.h.b16 %v69
    %v173 = vpack.c.b16 %v167, %v165
    %v174 = vpack.c.b16 %v168, %v166
    %v175 = vpack.c.b16 %v171, %v169
    %v176 = vpack.c.b16 %v172, %v170
    %vm181 = vcmask 261120
    %v183 = vsel %vm181, %v155, 0
    %185 = vmatpush.bf16.msra.mxu0 0
    %186 = vmatpush.bf16.msra.mxu0 0
    %187 = vmatpush.bf16.msra.mxu0 0
    %188 = vmatpush.bf16.msra.mxu0 0
    %189 = vmatpush.bf16.msra.mxu0 0
    %190 = vmatpush.bf16.msra.mxu0 0
    %191 = vmatpush.bf16.msra.mxu0 %v175
    %192 = vmatpush.bf16.msra.mxu0 %v173
    %193 = vmatmul.bf16.gmra.mxu0 %v183
    %v194 = vpop.f32.mrf.mxu0
    %v195 = vadd.f32 %v157, %v194
    %v196 = vpop.f32.mrf.mxu0
    %197 = vdwg.mxu0
    %198 = vmatpush.bf16.msra.mxu0 0
    %199 = vmatpush.bf16.msra.mxu0 0
    %200 = vmatpush.bf16.msra.mxu0 0
    %201 = vmatpush.bf16.msra.mxu0 0
    %202 = vmatpush.bf16.msra.mxu0 0
    %203 = vmatpush.bf16.msra.mxu0 0
    %204 = vmatpush.bf16.msra.mxu0 %v176
    %205 = vmatpush.bf16.msra.mxu0 %v174
    %206 = vmatmul.bf16.gmra.mxu0 %v183
    %v207 = vpop.f32.mrf.mxu0
    %v208 = vadd.f32 %v158, %v207
    %v209 = vpop.f32.mrf.mxu0
    %210 = vdwg.mxu0
    %v211 = vmax.f32 %v195, 0.0
    %v212 = vmax.f32 %v208, 0.0
    %v213 = vpack.c.bf16 %v211, %v211
    %v214 = vpack.c.bf16 %v212, %v212
    %v216 = vperm.slane %v103, 0
    %v217 = vperm.slane %v103, 1
    %v252 = vunpack.c.l.b16 %v71
    %v253 = vunpack.c.h.b16 %v71
    %v254 = vunpack.c.l.b16 %v72
    %v255 = vunpack.c.h.b16 %v72
    %v256 = vunpack.c.l.b16 %v73
    %v257 = vunpack.c.h.b16 %v73
    %v258 = vunpack.c.l.b16 %v74
    %v259 = vunpack.c.h.b16 %v74
    %v260 = vunpack.c.l.b16 %v75
    %v261 = vunpack.c.h.b16 %v75
    %v262 = vunpack.c.l.b16 %v76
    %v263 = vunpack.c.h.b16 %v76
    %v264 = vunpack.c.l.b16 %v77
    %v265 = vunpack.c.h.b16 %v77
    %v266 = vunpack.c.l.b16 %v78
    %v267 = vunpack.c.h.b16 %v78
    %v268 = vunpack.c.l.b16 %v79
    %v269 = vunpack.c.h.b16 %v79
    %v270 = vunpack.c.l.b16 %v80
    %v271 = vunpack.c.h.b16 %v80
    %v272 = vunpack.c.l.b16 %v81
    %v273 = vunpack.c.h.b16 %v81
    %v274 = vunpack.c.l.b16 %v82
    %v275 = vunpack.c.h.b16 %v82
    %v276 = vunpack.c.l.b16 %v83
    %v277 = vunpack.c.h.b16 %v83
    %v278 = vunpack.c.l.b16 %v84
    %v279 = vunpack.c.h.b16 %v84
    %v280 = vunpack.c.l.b16 %v85
    %v281 = vunpack.c.h.b16 %v85
    %v282 = vunpack.c.l.b16 %v86
    %v283 = vunpack.c.h.b16 %v86
    %v284 = vunpack.c.l.b16 %v87
    %v285 = vunpack.c.h.b16 %v87
    %v286 = vunpack.c.l.b16 %v88
    %v287 = vunpack.c.h.b16 %v88
    %v288 = vunpack.c.l.b16 %v89
    %v289 = vunpack.c.h.b16 %v89
    %v290 = vunpack.c.l.b16 %v90
    %v291 = vunpack.c.h.b16 %v90
    %v292 = vunpack.c.l.b16 %v91
    %v293 = vunpack.c.h.b16 %v91
    %v294 = vunpack.c.l.b16 %v92
    %v295 = vunpack.c.h.b16 %v92
    %v296 = vunpack.c.l.b16 %v93
    %v297 = vunpack.c.h.b16 %v93
    %v298 = vunpack.c.l.b16 %v94
    %v299 = vunpack.c.h.b16 %v94
    %v300 = vunpack.c.l.b16 %v95
    %v301 = vunpack.c.h.b16 %v95
    %v302 = vunpack.c.l.b16 %v96
    %v303 = vunpack.c.h.b16 %v96
    %v304 = vunpack.c.l.b16 %v97
    %v305 = vunpack.c.h.b16 %v97
    %v306 = vunpack.c.l.b16 %v98
    %v307 = vunpack.c.h.b16 %v98
    %v308 = vunpack.c.l.b16 %v99
    %v309 = vunpack.c.h.b16 %v99
    %v310 = vunpack.c.l.b16 %v100
    %v311 = vunpack.c.h.b16 %v100
    %v312 = vunpack.c.l.b16 %v101
    %v313 = vunpack.c.h.b16 %v101
    %v314 = vunpack.c.l.b16 %v102
    %v315 = vunpack.c.h.b16 %v102
    %v316 = vpack.c.b16 %v254, %v252
    %v317 = vpack.c.b16 %v255, %v253
    %v318 = vpack.c.b16 %v258, %v256
    %v319 = vpack.c.b16 %v259, %v257
    %v320 = vpack.c.b16 %v262, %v260
    %v321 = vpack.c.b16 %v263, %v261
    %v322 = vpack.c.b16 %v266, %v264
    %v323 = vpack.c.b16 %v267, %v265
    %v324 = vpack.c.b16 %v270, %v268
    %v325 = vpack.c.b16 %v271, %v269
    %v326 = vpack.c.b16 %v274, %v272
    %v327 = vpack.c.b16 %v275, %v273
    %v328 = vpack.c.b16 %v278, %v276
    %v329 = vpack.c.b16 %v279, %v277
    %v330 = vpack.c.b16 %v282, %v280
    %v331 = vpack.c.b16 %v283, %v281
    %v332 = vpack.c.b16 %v286, %v284
    %v333 = vpack.c.b16 %v287, %v285
    %v334 = vpack.c.b16 %v290, %v288
    %v335 = vpack.c.b16 %v291, %v289
    %v336 = vpack.c.b16 %v294, %v292
    %v337 = vpack.c.b16 %v295, %v293
    %v338 = vpack.c.b16 %v298, %v296
    %v339 = vpack.c.b16 %v299, %v297
    %v340 = vpack.c.b16 %v302, %v300
    %v341 = vpack.c.b16 %v303, %v301
    %v342 = vpack.c.b16 %v306, %v304
    %v343 = vpack.c.b16 %v307, %v305
    %v344 = vpack.c.b16 %v310, %v308
    %v345 = vpack.c.b16 %v311, %v309
    %v346 = vpack.c.b16 %v314, %v312
    %v347 = vpack.c.b16 %v315, %v313
    %380 = vmatpush.bf16.msra.mxu0 %v330
    %381 = vmatpush.bf16.msra.mxu0 %v328
    %382 = vmatpush.bf16.msra.mxu0 %v326
    %383 = vmatpush.bf16.msra.mxu0 %v324
    %384 = vmatpush.bf16.msra.mxu0 %v322
    %385 = vmatpush.bf16.msra.mxu0 %v320
    %386 = vmatpush.bf16.msra.mxu0 %v318
    %387 = vmatpush.bf16.msra.mxu0 %v316
    %388 = vmatmul.bf16.gmra.mxu0 %v213
    %v389 = vpop.f32.mrf.mxu0
    %v390 = vadd.f32 %v216, %v389
    %v391 = vpop.f32.mrf.mxu0
    %392 = vdwg.mxu0
    %393 = vmatpush.bf16.msra.mxu0 %v346
    %394 = vmatpush.bf16.msra.mxu0 %v344
    %395 = vmatpush.bf16.msra.mxu0 %v342
    %396 = vmatpush.bf16.msra.mxu0 %v340
    %397 = vmatpush.bf16.msra.mxu0 %v338
    %398 = vmatpush.bf16.msra.mxu0 %v336
    %399 = vmatpush.bf16.msra.mxu0 %v334
    %400 = vmatpush.bf16.msra.mxu0 %v332
    %401 = vmatmul.bf16.gmra.mxu0 %v214
    %v402 = vpop.f32.mrf.mxu0
    %v403 = vadd.f32 %v390, %v402
    %v404 = vpop.f32.mrf.mxu0
    %405 = vdwg.mxu0
    %406 = vmatpush.bf16.msra.mxu0 %v331
    %407 = vmatpush.bf16.msra.mxu0 %v329
    %408 = vmatpush.bf16.msra.mxu0 %v327
    %409 = vmatpush.bf16.msra.mxu0 %v325
    %410 = vmatpush.bf16.msra.mxu0 %v323
    %411 = vmatpush.bf16.msra.mxu0 %v321
    %412 = vmatpush.bf16.msra.mxu0 %v319
    %413 = vmatpush.bf16.msra.mxu0 %v317
    %414 = vmatmul.bf16.gmra.mxu0 %v213
    %v415 = vpop.f32.mrf.mxu0
    %v416 = vadd.f32 %v217, %v415
    %v417 = vpop.f32.mrf.mxu0
    %418 = vdwg.mxu0
    %419 = vmatpush.bf16.msra.mxu0 %v347
    %420 = vmatpush.bf16.msra.mxu0 %v345
    %421 = vmatpush.bf16.msra.mxu0 %v343
    %422 = vmatpush.bf16.msra.mxu0 %v341
    %423 = vmatpush.bf16.msra.mxu0 %v339
    %424 = vmatpush.bf16.msra.mxu0 %v337
    %425 = vmatpush.bf16.msra.mxu0 %v335
    %426 = vmatpush.bf16.msra.mxu0 %v333
    %427 = vmatmul.bf16.gmra.mxu0 %v214
    %v428 = vpop.f32.mrf.mxu0
    %v429 = vadd.f32 %v416, %v428
    %v430 = vpop.f32.mrf.mxu0
    %431 = vdwg.mxu0
    %v432 = vmax.f32 %v403, 0.0
    %v433 = vmax.f32 %v429, 0.0
    %v434 = vpack.c.bf16 %v432, %v432
    %v435 = vpack.c.bf16 %v433, %v433
    %v437 = vperm.slane %v136, 0
    %v471 = vunpack.c.l.b16 %v104
    %v472 = vunpack.c.l.b16 %v105
    %v473 = vunpack.c.l.b16 %v106
    %v474 = vunpack.c.l.b16 %v107
    %v475 = vunpack.c.l.b16 %v108
    %v476 = vunpack.c.l.b16 %v109
    %v477 = vunpack.c.l.b16 %v110
    %v478 = vunpack.c.l.b16 %v111
    %v479 = vunpack.c.l.b16 %v112
    %v480 = vunpack.c.l.b16 %v113
    %v481 = vunpack.c.l.b16 %v114
    %v482 = vunpack.c.l.b16 %v115
    %v483 = vunpack.c.l.b16 %v116
    %v484 = vunpack.c.l.b16 %v117
    %v485 = vunpack.c.l.b16 %v118
    %v486 = vunpack.c.l.b16 %v119
    %v487 = vunpack.c.l.b16 %v120
    %v488 = vunpack.c.l.b16 %v121
    %v489 = vunpack.c.l.b16 %v122
    %v490 = vunpack.c.l.b16 %v123
    %v491 = vunpack.c.l.b16 %v124
    %v492 = vunpack.c.l.b16 %v125
    %v493 = vunpack.c.l.b16 %v126
    %v494 = vunpack.c.l.b16 %v127
    %v495 = vunpack.c.l.b16 %v128
    %v496 = vunpack.c.l.b16 %v129
    %v497 = vunpack.c.l.b16 %v130
    %v498 = vunpack.c.l.b16 %v131
    %v499 = vunpack.c.l.b16 %v132
    %v500 = vunpack.c.l.b16 %v133
    %v501 = vunpack.c.l.b16 %v134
    %v502 = vunpack.c.l.b16 %v135
    %v503 = vpack.c.b16 %v472, %v471
    %v504 = vpack.c.b16 %v474, %v473
    %v505 = vpack.c.b16 %v476, %v475
    %v506 = vpack.c.b16 %v478, %v477
    %v507 = vpack.c.b16 %v480, %v479
    %v508 = vpack.c.b16 %v482, %v481
    %v509 = vpack.c.b16 %v484, %v483
    %v510 = vpack.c.b16 %v486, %v485
    %v511 = vpack.c.b16 %v488, %v487
    %v512 = vpack.c.b16 %v490, %v489
    %v513 = vpack.c.b16 %v492, %v491
    %v514 = vpack.c.b16 %v494, %v493
    %v515 = vpack.c.b16 %v496, %v495
    %v516 = vpack.c.b16 %v498, %v497
    %v517 = vpack.c.b16 %v500, %v499
    %v518 = vpack.c.b16 %v502, %v501
    %535 = vmatpush.bf16.msra.mxu0 %v510
    %536 = vmatpush.bf16.msra.mxu0 %v509
    %537 = vmatpush.bf16.msra.mxu0 %v508
    %538 = vmatpush.bf16.msra.mxu0 %v507
    %539 = vmatpush.bf16.msra.mxu0 %v506
    %540 = vmatpush.bf16.msra.mxu0 %v505
    %541 = vmatpush.bf16.msra.mxu0 %v504
    %542 = vmatpush.bf16.msra.mxu0 %v503
    %543 = vmatmul.bf16.gmra.mxu0 %v434
    %v544 = vpop.f32.mrf.mxu0
    %v545 = vadd.f32 %v437, %v544
    %v546 = vpop.f32.mrf.mxu0
    %547 = vdwg.mxu0
    %548 = vmatpush.bf16.msra.mxu0 %v518
    %549 = vmatpush.bf16.msra.mxu0 %v517
    %550 = vmatpush.bf16.msra.mxu0 %v516
    %551 = vmatpush.bf16.msra.mxu0 %v515
    %552 = vmatpush.bf16.msra.mxu0 %v514
    %553 = vmatpush.bf16.msra.mxu0 %v513
    %554 = vmatpush.bf16.msra.mxu0 %v512
    %555 = vmatpush.bf16.msra.mxu0 %v511
    %556 = vmatmul.bf16.gmra.mxu0 %v435
    %v557 = vpop.f32.mrf.mxu0
    %v558 = vadd.f32 %v545, %v557
    %v559 = vpop.f32.mrf.mxu0
    %560 = vdwg.mxu0
    %v561 = vmax.f32 %v558, 0.0
    %v562 = vpack.c.bf16 %v561, %v561
    %v564 = vperm.slane %v153, 0
    %v582 = vunpack.c.l.b16 %v137
    %v583 = vunpack.c.l.b16 %v138
    %v584 = vunpack.c.l.b16 %v139
    %v585 = vunpack.c.l.b16 %v140
    %v586 = vunpack.c.l.b16 %v141
    %v587 = vunpack.c.l.b16 %v142
    %v588 = vunpack.c.l.b16 %v143
    %v589 = vunpack.c.l.b16 %v144
    %v590 = vunpack.c.l.b16 %v145
    %v591 = vunpack.c.l.b16 %v146
    %v592 = vunpack.c.l.b16 %v147
    %v593 = vunpack.c.l.b16 %v148
    %v594 = vunpack.c.l.b16 %v149
    %v595 = vunpack.c.l.b16 %v150
    %v596 = vunpack.c.l.b16 %v151
    %v597 = vunpack.c.l.b16 %v152
    %v598 = vpack.c.b16 %v583, %v582
    %v599 = vpack.c.b16 %v585, %v584
    %v600 = vpack.c.b16 %v587, %v586
    %v601 = vpack.c.b16 %v589, %v588
    %v602 = vpack.c.b16 %v591, %v590
    %v603 = vpack.c.b16 %v593, %v592
    %v604 = vpack.c.b16 %v595, %v594
    %v605 = vpack.c.b16 %v597, %v596
    %614 = vmatpush.bf16.msra.mxu0 %v605
    %615 = vmatpush.bf16.msra.mxu0 %v604
    %616 = vmatpush.bf16.msra.mxu0 %v603
    %617 = vmatpush.bf16.msra.mxu0 %v602
    %618 = vmatpush.bf16.msra.mxu0 %v601
    %619 = vmatpush.bf16.msra.mxu0 %v600
    %620 = vmatpush.bf16.msra.mxu0 %v599
    %621 = vmatpush.bf16.msra.mxu0 %v598
    %622 = vmatmul.bf16.gmra.mxu0 %v562
    %v623 = vpop.f32.mrf.mxu0
    %v624 = vadd.f32 %v564, %v623
    %v625 = vpop.f32.mrf.mxu0
    %626 = vdwg.mxu0
    %vm627 = vcmask 64512
    %628 = vst.msk [vmem:[#allocation7] sm:$0xff] %vm627, %v624
    // Predicated region
    $region46: #{tpu_custom_call.1} parent=1 // pred_check
      _
    $region47: #{tpu_custom_call.1} parent=1 // pred_check_branch
      %630 = sbr.rel (0) target = $region49
    $region48: #{tpu_custom_call.1} parent=1 // pred_region
      %632 = vsyncadd [#allocation4], 0
      %s634 = sshll.u32 [#allocation7], 4
      %s635 = int_to_ptr.vmem [resolvable:$true] %s634
      %s636 = sshll.u32 %s9, 4
      %s637 = int_to_ptr.hbm [resolvable:$true] %s636
      %639 = dma.vmem_to_hbm [thread:$0]  %s635, 128, %s637, [#allocation4]
    $region49: #{tpu_custom_call.1} parent=1 // pred_fallthru
      _
    // Predicated region
    $region50: #{tpu_custom_call.1} parent=1 // pred_check
      _
    $region51: #{tpu_custom_call.1} parent=1 // pred_check_branch
      %641 = sbr.rel (0) target = $region53
    $region52: #{tpu_custom_call.1} parent=1 // pred_region
      %643 = dma.done [#allocation4], 128
    $region53: #{tpu_custom_call.1} parent=1 // pred_fallthru
      _
    %644 = vsyncpa [#allocation3], 1
    %645 = vsyncpa [#allocation6], 1
    %646 = vsyncpa [#allocation4], 1

</llo_original>
